<compile_context>
chip_gen: v7x
topology: tpu7x:2x2x1
jax: 0.10.0
libtpu: 0.0.40
codegen_flags: <defaults>
</compile_context>

<pallas_src>
import functools

import jax
import jax.numpy as jnp
from jax import lax
from jax.experimental import pallas as pl
from jax.experimental.pallas import tpu as pltpu


LANES = 128
SUBLANES = 8
MAX_BLOCK_ROWS = 8192   # (8192, 128) f32 = 4 MiB per input per pipeline buffer
CHUNK_ROWS = 256        # in-kernel accumulation chunk: (256, 128) f32 = 128 KiB


def _fold_to_vreg(a):
    """(r, 128) -> (8, 128) by summing groups of 8 sublanes (pure vreg adds)."""
    r = a.shape[0]
    return a.reshape(r // SUBLANES, SUBLANES, LANES).sum(axis=0)


def _iou_partial_kernel(x_ref, t_ref, out_ref, *, block_rows, last_valid_rows,
                        num_blocks):
    """Per-block partial sums.

    out_ref block is (1, 16, 128): rows 0:8 hold sum(sigmoid(x) * t) and rows
    8:16 hold sum(sigmoid(x) + t), each reduced to one vreg-shaped tile.
    """

    def chunk_contrib(row0, nrows):
        x = x_ref[pl.ds(row0, nrows), :].astype(jnp.float32)
        t = t_ref[pl.ds(row0, nrows), :].astype(jnp.float32)
        # Exact sigmoid (exp lives on the EUP slot); approximate reciprocal is
        # only worth it if a bundle dump shows VALU/EUP co-binding on v7x.
        p = jax.nn.sigmoid(x)
        return _fold_to_vreg(p * t), _fold_to_vreg(p + t)

    def reduce_rows(valid_rows):
        """Accumulate `valid_rows` (static int) rows of this block."""
        n_full = valid_rows // CHUNK_ROWS
        rem = valid_rows % CHUNK_ROWS            # multiple of 8 by construction
        acc = (jnp.zeros((SUBLANES, LANES), jnp.float32),
               jnp.zeros((SUBLANES, LANES), jnp.float32))

        def body(c, carry):
            ai, at = carry
            row0 = pl.multiple_of(c * CHUNK_ROWS, CHUNK_ROWS)
            di, dt = chunk_contrib(row0, CHUNK_ROWS)
            return ai + di, at + dt

        if n_full > 0:
            acc = lax.fori_loop(0, n_full, body, acc)
        if rem > 0:
            di, dt = chunk_contrib(n_full * CHUNK_ROWS, rem)
            acc = (acc[0] + di, acc[1] + dt)

        out_ref[0, 0:SUBLANES, :] = acc[0]
        out_ref[0, SUBLANES:2 * SUBLANES, :] = acc[1]

    if num_blocks == 1 or last_valid_rows == block_rows:
        # Every block is full (or there is only one block): single straight-line
        # path, no branches, no masks.
        reduce_rows(last_valid_rows if num_blocks == 1 else block_rows)
    else:
        last = num_blocks - 1
        pid = pl.program_id(0)

        @pl.when(pid != last)
        def _():
            reduce_rows(block_rows)

        @pl.when(pid == last)
        def _():
            # Partial edge block: only the statically-known valid rows are read,
            # so the unspecified tail of the VMEM window is never touched.
            reduce_rows(last_valid_rows)


def iou_pallas(inputs, targets, smooth=1.0):
    """100 * (sum(sig(x)*t)+smooth) / (sum(sig(x)+t)-sum(sig(x)*t)+smooth)."""
    x = jnp.reshape(inputs, (-1,))   # keep native dtype; reshape is free
    t = jnp.reshape(targets, (-1,))
    n = x.shape[0]

    align = SUBLANES * LANES         # 1024 -> kernel rows are a multiple of 8
    n_main = (n // align) * align

    inter = jnp.float32(0.0)
    total = jnp.float32(0.0)

    if n_main > 0:
        x_main = x if n_main == n else lax.slice(x, (0,), (n_main,))
        t_main = t if n_main == n else lax.slice(t, (0,), (n_main,))

        rows = n_main // LANES
        block_rows = min(MAX_BLOCK_ROWS, rows)
        num_blocks = pl.cdiv(rows, block_rows)
        last_valid_rows = rows - (num_blocks - 1) * block_rows

        x2 = x_main.reshape(rows, LANES)
        t2 = t_main.reshape(rows, LANES)

        kernel = functools.partial(
            _iou_partial_kernel,
            block_rows=block_rows,
            last_valid_rows=last_valid_rows,
            num_blocks=num_blocks,
        )

        partials = pl.pallas_call(
            kernel,
            out_shape=jax.ShapeDtypeStruct(
                (num_blocks, 2 * SUBLANES, LANES), jnp.float32),
            grid_spec=pltpu.PrefetchScalarGridSpec(
                num_scalar_prefetch=0,
                grid=(num_blocks,),
                in_specs=[
                    pl.BlockSpec((block_rows, LANES), lambda i: (i, 0)),
                    pl.BlockSpec((block_rows, LANES), lambda i: (i, 0)),
                ],
                out_specs=pl.BlockSpec((1, 2 * SUBLANES, LANES),
                                       lambda i: (i, 0, 0)),
            ),
            compiler_params=pltpu.CompilerParams(
                # Race-free parallel grid (each step owns its output slot);
                # lets v7x shard blocks across its 2 TensorCores.
                dimension_semantics=("parallel",),
                # 2 inputs x 2 buffers x <=4 MiB = 16 MiB + small scratch:
                # 32 MiB is enough on every generation and safe under v7x's
                # 64 MiB physical VMEM.
                vmem_limit_bytes=32 * 1024 * 1024,
            ),
        )(x2, t2)

        inter = inter + jnp.sum(partials[:, 0:SUBLANES, :])
        total = total + jnp.sum(partials[:, SUBLANES:, :])

    if n_main != n:
        # < 1024 leftover elements: tiny plain-JAX path (no full-array pad copy).
        x_tail = lax.slice(x, (n_main,), (n,)).astype(jnp.float32)
        t_tail = lax.slice(t, (n_main,), (n,)).astype(jnp.float32)
        p_tail = jax.nn.sigmoid(x_tail)
        inter = inter + jnp.sum(p_tail * t_tail)
        total = total + jnp.sum(p_tail + t_tail)

    union = total - inter
    return (inter + smooth) / (union + smooth) * 100.0


def iou_ref(inputs, targets, smooth=1.0):
    p = jax.nn.sigmoid(inputs.astype(jnp.float32)).ravel()
    t = targets.astype(jnp.float32).ravel()
    inter = jnp.sum(p * t)
    total = jnp.sum(p + t)
    union = total - inter
    return (inter + smooth) / (union + smooth) * 100.0


if __name__ == "__main__":
    key = jax.random.PRNGKey(0)
    k1, k2, k3, k4, k5, k6 = jax.random.split(key, 6)

    # NCHW: batch=2, channels=4, spatial=16x16 (exact 1024-aligned path,
    # single block, remainder-chunk-only reduction).
    inputs = jax.random.normal(k1, (2, 4, 16, 16), dtype=jnp.float32)
    targets = (jax.random.uniform(k2, (2, 4, 16, 16)) > 0.5).astype(jnp.float32)
    out = iou_pallas(inputs, targets, smooth=1.0)
    jax.block_until_ready(out)
    ref = iou_ref(inputs, targets, smooth=1.0)
    assert jnp.allclose(out, ref, rtol=1e-4, atol=1e-3), (out, ref)

    # Larger aligned case: exercises the in-kernel fori_loop chunking.
    inputs1 = jax.random.normal(k5, (4, 8, 64, 64), dtype=jnp.float32)
    targets1 = (jax.random.uniform(k6, (4, 8, 64, 64)) > 0.5).astype(jnp.float32)
    out1 = iou_pallas(inputs1, targets1, smooth=1.0)
    jax.block_until_ready(out1)
    ref1 = iou_ref(inputs1, targets1, smooth=1.0)
    assert jnp.allclose(out1, ref1, rtol=1e-4, atol=1e-3), (out1, ref1)

    # Odd-sized case exercises the aligned-prefix + plain-JAX-tail path
    # (no full-array pad copy, no in-kernel mask).
    inputs2 = jax.random.normal(k3, (2, 3, 15, 17), dtype=jnp.float32)
    targets2 = (jax.random.uniform(k4, (2, 3, 15, 17)) > 0.5).astype(jnp.float32)
    out2 = iou_pallas(inputs2, targets2, smooth=1.0)
    jax.block_until_ready(out2)
    ref2 = iou_ref(inputs2, targets2, smooth=1.0)
    assert jnp.allclose(out2, ref2, rtol=1e-4, atol=1e-3), (out2, ref2)

    print("KERNEL_OK")
</pallas_src>

<mosaic_0001>
module attributes {stable_mosaic.version = 11 : i64} {
  func.func @_iou_partial_kernel(%arg0: i32, %arg1: memref<16x128xf32, #tpu.memory_space<vmem>>, %arg2: memref<16x128xf32, #tpu.memory_space<vmem>>, %arg3: memref<1x16x128xf32, #tpu.memory_space<vmem>>) attributes {dimension_semantics = [#tpu.dimension_semantics<parallel>], iteration_bounds = array<i64: 1>, scalar_prefetch = 0 : i64, scratch_operands = 0 : i64, tpu.core_type = #tpu.core_type<tc>, window_params = [{transform_indices = @transform_0, window_bounds = array<i64: 16, 128>}, {transform_indices = @transform_1, window_bounds = array<i64: 16, 128>}, {transform_indices = @transform_2, window_bounds = array<i64: 1, 16, 128>}]} {
    %cst = arith.constant 0.000000e+00 : f32
    %0 = vector.broadcast %cst : f32 to vector<8x128xf32>
    %cst_0 = arith.constant 0.000000e+00 : f32
    %1 = vector.broadcast %cst_0 : f32 to vector<8x128xf32>
    %c0 = arith.constant 0 : index
    %c0_1 = arith.constant 0 : index
    %2 = vector.load %arg1[%c0, %c0_1] : memref<16x128xf32, #tpu.memory_space<vmem>>, vector<16x128xf32>
    %c0_2 = arith.constant 0 : index
    %c0_3 = arith.constant 0 : index
    %3 = vector.load %arg2[%c0_2, %c0_3] : memref<16x128xf32, #tpu.memory_space<vmem>>, vector<16x128xf32>
    %4 = arith.negf %2 : vector<16x128xf32>
    %5 = math.exp %4 : vector<16x128xf32>
    %cst_4 = arith.constant 1.000000e+00 : f32
    %6 = vector.broadcast %cst_4 : f32 to vector<16x128xf32>
    %7 = arith.addf %6, %5 : vector<16x128xf32>
    %8 = arith.divf %6, %7 : vector<16x128xf32>
    %9 = arith.mulf %8, %3 : vector<16x128xf32>
    %10 = vector.shape_cast %9 : vector<16x128xf32> to vector<2x8x128xf32>
    %cst_5 = arith.constant dense<0.000000e+00> : vector<8x128xf32>
    %11 = vector.multi_reduction <add>, %10, %cst_5 [0] : vector<2x8x128xf32> to vector<8x128xf32>
    %12 = arith.addf %8, %3 : vector<16x128xf32>
    %13 = vector.shape_cast %12 : vector<16x128xf32> to vector<2x8x128xf32>
    %cst_6 = arith.constant dense<0.000000e+00> : vector<8x128xf32>
    %14 = vector.multi_reduction <add>, %13, %cst_6 [0] : vector<2x8x128xf32> to vector<8x128xf32>
    %15 = arith.addf %0, %11 : vector<8x128xf32>
    %16 = arith.addf %1, %14 : vector<8x128xf32>
    %c0_7 = arith.constant 0 : index
    %c0_8 = arith.constant 0 : index
    %c0_9 = arith.constant 0 : index
    %17 = vector.load %arg3[%c0_7, %c0_8, %c0_9] : memref<1x16x128xf32, #tpu.memory_space<vmem>>, vector<1x8x128xf32>
    %18 = vector.shape_cast %17 : vector<1x8x128xf32> to vector<8x128xf32>
    %19 = vector.shape_cast %15 : vector<8x128xf32> to vector<1x8x128xf32>
    tpu.vector_store %arg3[%c0_7, %c0_8, %c0_9], %19 {strides = array<i32>} : memref<1x16x128xf32, #tpu.memory_space<vmem>>, vector<1x8x128xf32>,
    %c0_10 = arith.constant 0 : index
    %c8 = arith.constant 8 : index
    %c0_11 = arith.constant 0 : index
    %20 = vector.load %arg3[%c0_10, %c8, %c0_11] : memref<1x16x128xf32, #tpu.memory_space<vmem>>, vector<1x8x128xf32>
    %21 = vector.shape_cast %20 : vector<1x8x128xf32> to vector<8x128xf32>
    %22 = vector.shape_cast %16 : vector<8x128xf32> to vector<1x8x128xf32>
    tpu.vector_store %arg3[%c0_10, %c8, %c0_11], %22 {strides = array<i32>} : memref<1x16x128xf32, #tpu.memory_space<vmem>>, vector<1x8x128xf32>,
    return
  }
  func.func @transform_0(%arg0: i32) -> (i32, i32) {
    %c0_i32 = arith.constant 0 : i32
    %c0_i32_0 = arith.constant 0 : i32
    return %arg0, %c0_i32 : i32, i32
  }
  func.func @transform_1(%arg0: i32) -> (i32, i32) {
    %c0_i32 = arith.constant 0 : i32
    %c0_i32_0 = arith.constant 0 : i32
    return %arg0, %c0_i32 : i32, i32
  }
  func.func @transform_2(%arg0: i32) -> (i32, i32, i32) {
    %c0_i32 = arith.constant 0 : i32
    %c0_i32_0 = arith.constant 0 : i32
    %c0_i32_1 = arith.constant 0 : i32
    return %arg0, %c0_i32, %c0_i32_0 : i32, i32, i32
  }
}

</mosaic_0001>

<llo_original>
// kernel: tpu_custom_call.1
$region0: #{tpu_custom_call.1}
  #allocation0 [shape = 'u32[]', space=smem, size = 0x4, offset = 0x4, fixed_abs, tag = 'smem constant byte address 0x4 - core index']
  #allocation1 [shape = 'u32[144,128]{1,0:T(1,128)}', space=vmem, size = 0x12000, scoped, tag = 'internal scratch']
  %s0 = inlined_call_operand.hbm [shape: f32[16,128], index: 0, kind: input, shape index: {}]
  %s1 = inlined_call_operand.hbm [shape: f32[16,128], index: 1, kind: input, shape index: {}]
  %s2 = inlined_call_operand.hbm [shape: f32[1,16,128], index: 2, kind: output, shape index: {}]
  %s3 = sld [smem:[#allocation0]]
  $region26: #{tpu_custom_call.1} parent=0
    _
  %s5 = ssub.s32 1, %s3
  %s6 = scalar_select 0, %s5, %s3
  $region1: #{tpu_custom_call.1} parent=0
    #allocation2 [shape = 'u8[8192]{0}', space=vmem, size = 0x2000, scoped, tag = 'input window, operand 0, single buffered']
    #allocation3 [shape = 's32[1]{0}', space=sflag, size = 0x4, scoped, tag = 'scoped memory for tpu_custom_call.1']
    #allocation4 [shape = 's32[1]{0}', space=sflag, size = 0x4, scoped, tag = 'scoped memory for tpu_custom_call.1']
    #allocation5 [shape = 'u8[8192]{0}', space=vmem, size = 0x2000, scoped, tag = 'input window, operand 1, single buffered']
    #allocation6 [shape = 's32[1]{0}', space=sflag, size = 0x4, scoped, tag = 'scoped memory for tpu_custom_call.1']
    #allocation7 [shape = 'u8[8192]{0}', space=vmem, size = 0x2000, scoped, tag = 'output window, operand 0, single buffered']
    %7 = vsyncpa [#allocation3], 0
    %8 = vsyncpa [#allocation6], 0
    %9 = vsyncpa [#allocation4], 0
    // Predicated region
    $region2: #{tpu_custom_call.1} parent=1 // pred_check
      _
    $region3: #{tpu_custom_call.1} parent=1 // pred_check_branch
      %11 = sbr.rel (0) target = $region5
    $region4: #{tpu_custom_call.1} parent=1 // pred_region
      %s13 = ssub.s32 256, 256
      %14 = vsyncadd [#allocation3], %s13
      %s15 = sshll.u32 [#allocation2], 4
      %s16 = int_to_ptr.vmem [resolvable:$true] %s15
      %21 = dma.hbm_to_vmem [thread:$0]  %s0, 256, %s16, [#allocation3], 128, 128, 8
    $region5: #{tpu_custom_call.1} parent=1 // pred_fallthru
      _
    // Predicated region
    $region6: #{tpu_custom_call.1} parent=1 // pred_check
      _
    $region7: #{tpu_custom_call.1} parent=1 // pred_check_branch
      %23 = sbr.rel (0) target = $region9
    $region8: #{tpu_custom_call.1} parent=1 // pred_region
      %s25 = ssub.s32 256, 256
      %26 = vsyncadd [#allocation6], %s25
      %s27 = sshll.u32 [#allocation5], 4
      %s28 = int_to_ptr.vmem [resolvable:$true] %s27
      %33 = dma.hbm_to_vmem [thread:$0]  %s1, 256, %s28, [#allocation6], 128, 128, 8
    $region9: #{tpu_custom_call.1} parent=1 // pred_fallthru
      _
    // Predicated region
    $region10: #{tpu_custom_call.1} parent=1 // pred_check
      _
    $region11: #{tpu_custom_call.1} parent=1 // pred_check_branch
      %35 = sbr.rel (0) target = $region13
    $region12: #{tpu_custom_call.1} parent=1 // pred_region
      %36 = dma.done [#allocation3], 256
    $region13: #{tpu_custom_call.1} parent=1 // pred_fallthru
      _
    // Predicated region
    $region14: #{tpu_custom_call.1} parent=1 // pred_check
      _
    $region15: #{tpu_custom_call.1} parent=1 // pred_check_branch
      %38 = sbr.rel (0) target = $region17
    $region16: #{tpu_custom_call.1} parent=1 // pred_region
      %39 = dma.done [#allocation6], 256
    $region17: #{tpu_custom_call.1} parent=1 // pred_fallthru
      _
    %v40 = vld [vmem:[#allocation2] sm:$0xff]
    %v41 = vld [vmem:[#allocation2 + $0x8] sm:$0xff]
    %v42 = vld [vmem:[#allocation5] sm:$0xff]
    %v43 = vld [vmem:[#allocation5 + $0x8] sm:$0xff]
    %v44 = vxor.u32 %v40, 2147483648
    %v45 = vxor.u32 %v41, 2147483648
    %v46 = vmul.f32 %v44, 1.442695
    %v47 = vpow.pop %v46
    %v48 = vmul.f32 %v45, 1.442695
    %v49 = vpow.pop %v48
    %v50 = vadd.f32 %v47, 1.0
    %v51 = vadd.f32 %v49, 1.0
    %v52 = vrcp.pop %v50
    %v53 = vmul.f32 1.0, %v52
    %v54 = vrcp.pop %v51
    %v55 = vmul.f32 1.0, %v54
    %v56 = vmul.f32 %v53, %v42
    %v57 = vmul.f32 %v55, %v43
    %v58 = vadd.f32 %v56, %v57
    %v59 = vadd.f32 %v53, %v42
    %v60 = vadd.f32 %v55, %v43
    %v61 = vadd.f32 %v59, %v60
    %v62 = vadd.f32 %v58, 0.0
    %v63 = vadd.f32 %v61, 0.0
    %64 = vst [vmem:[#allocation7] sm:$0xff] %v62
    %65 = vst [vmem:[#allocation7 + $0x8] sm:$0xff] %v63
    // Predicated region
    $region18: #{tpu_custom_call.1} parent=1 // pred_check
      _
    $region19: #{tpu_custom_call.1} parent=1 // pred_check_branch
      %67 = sbr.rel (0) target = $region21
    $region20: #{tpu_custom_call.1} parent=1 // pred_region
      %s69 = ssub.s32 256, 256
      %70 = vsyncadd [#allocation4], %s69
      %s71 = sshll.u32 [#allocation7], 4
      %s72 = int_to_ptr.vmem [resolvable:$true] %s71
      %77 = dma.vmem_to_hbm [thread:$0]  %s72, 256, %s2, [#allocation4], 128, 128, 8
    $region21: #{tpu_custom_call.1} parent=1 // pred_fallthru
      _
    // Predicated region
    $region22: #{tpu_custom_call.1} parent=1 // pred_check
      _
    $region23: #{tpu_custom_call.1} parent=1 // pred_check_branch
      %79 = sbr.rel (0) target = $region25
    $region24: #{tpu_custom_call.1} parent=1 // pred_region
      %80 = dma.done [#allocation4], 256
    $region25: #{tpu_custom_call.1} parent=1 // pred_fallthru
      _
    %81 = vsyncpa [#allocation3], 1
    %82 = vsyncpa [#allocation6], 1
    %83 = vsyncpa [#allocation4], 1

</llo_original>
